<compile_context>
chip_gen: v7x
topology: tpu7x:2x2x1
jax: 0.10.0
libtpu: 0.0.40
codegen_flags: <defaults>
</compile_context>

<pallas_src>
import jax
import jax.numpy as jnp
from jax.experimental import pallas as pl
from jax.experimental.pallas import tpu as pltpu


BN_EPS = 1e-5
FC = 128            # hidden width of the module (fc1_units == fc2_units == 128)
LANES = 128         # lane-dense padding for states / actions


def _batchnorm_train(h, gamma, beta):
    """BatchNorm1d (training mode), one-pass form.

    mu  = E[h],  var = max(E[h^2] - mu^2, 0)  (biased),
    y   = h * (gamma * rsqrt(var+eps)) + (beta - mu * gamma * rsqrt(var+eps))
    """
    n = h.shape[0]
    inv_n = 1.0 / n
    s1 = jnp.sum(h, axis=0, keepdims=True)
    s2 = jnp.sum(h * h, axis=0, keepdims=True)
    mu = s1 * inv_n
    var = jnp.maximum(s2 * inv_n - mu * mu, 0.0)   # guard f32 cancellation
    inv = jax.lax.rsqrt(var + BN_EPS)
    scale = gamma * inv
    shift = beta - mu * scale
    return h * scale + shift


def actor_kernel(x_ref, w_ref, p_ref, o_ref):
    """One grid step == one independent evaluation (one BatchNorm batch)."""
    # Packed (8, 128) parameter tile: one row per small parameter vector.
    p = p_ref[...]
    b1, g1, be1 = p[0:1, :], p[1:2, :], p[2:3, :]
    b2, g2, be2 = p[3:4, :], p[4:5, :], p[5:6, :]
    b3 = p[6:7, :]                      # zero-padded beyond action_size

    mxu_dtype = w_ref.dtype             # bf16 weights -> bf16 MXU inputs

    # Static, tile-aligned views into the single (3*128, 128) weight slab.
    w1 = w_ref[0 * FC:1 * FC, :]        # (128,128), rows >= S are zero
    w2 = w_ref[1 * FC:2 * FC, :]        # (128,128)
    w3 = w_ref[2 * FC:3 * FC, :]        # (128,128), cols >= A are zero

    # fc1 -> ReLU -> BatchNorm1d   (x lane-padded with zeros => K=128 pass)
    x = x_ref[...].astype(mxu_dtype)
    h = jnp.dot(x, w1, preferred_element_type=jnp.float32) + b1
    h = jnp.maximum(h, 0.0)
    h = _batchnorm_train(h, g1, be1)

    # fc2 -> ReLU -> BatchNorm1d
    h = jnp.dot(h.astype(mxu_dtype), w2,
                preferred_element_type=jnp.float32) + b2
    h = jnp.maximum(h, 0.0)
    h = _batchnorm_train(h, g2, be2)

    # fc3 (zero-padded to 128 lanes) -> Tanh ; lane-dense unmasked store
    h = jnp.dot(h.astype(mxu_dtype), w3,
                preferred_element_type=jnp.float32) + b3
    o_ref[...] = jnp.tanh(h).astype(o_ref.dtype)


def actor_forward(x_padded, kernel_params, eval_batch):
    """Run E independent Actor forward passes in one Pallas call.

    x_padded: (E*eval_batch, 128) f32 lane-padded states; each contiguous
    eval_batch-row block is one BatchNorm batch (one evaluation).
    Returns the lane-dense (E*eval_batch, 128) action slab; valid action values
    live in lanes [:action_size] (slice at the point of consumption).
    """
    w_slab, pvec, action_size = kernel_params
    total, k_pad = x_padded.shape
    B = eval_batch
    assert total % B == 0, "total rows must be a multiple of eval_batch"
    assert k_pad == LANES
    E = total // B

    # Advisory cost hint: 3 (padded) 128-wide matmuls + tanh per output lane.
    flops = int(2 * total * (LANES * FC + FC * FC + FC * FC))
    transcendentals = int(total * LANES)
    bytes_accessed = int(x_padded.size * 4 + w_slab.size * 2 +
                         pvec.size * 4 + total * LANES * 4)
    cost = pl.CostEstimate(flops=flops, transcendentals=transcendentals,
                           bytes_accessed=bytes_accessed)

    return pl.pallas_call(
        actor_kernel,
        out_shape=jax.ShapeDtypeStruct((total, LANES), jnp.float32),
        grid=(E,),
        in_specs=[
            # per-evaluation state block
            pl.BlockSpec((B, LANES), lambda e: (e, 0)),
            # weight slab + packed params: constant index_map -> stay resident
            pl.BlockSpec(w_slab.shape, lambda e: (0, 0)),
            pl.BlockSpec(pvec.shape, lambda e: (0, 0)),
        ],
        out_specs=pl.BlockSpec((B, LANES), lambda e: (e, 0)),
        compiler_params=pltpu.CompilerParams(
            dimension_semantics=("parallel",)),
        cost_estimate=cost,
    )(x_padded, w_slab, pvec)


def pad_states(x, k_pad=LANES):
    """Zero-pad (N, S) states to (N, 128) lanes (unmasked loads, K=128 MXU)."""
    n, s = x.shape
    assert s <= k_pad
    return jnp.zeros((n, k_pad), x.dtype).at[:, :s].set(x)


def init_actor_params(key, state_size, action_size, fc1_units=128, fc2_units=128):
    """f32 parameters matching the PyTorch module:
       Linear weights ~ Xavier-uniform (stored as (in, out)), Linear biases = 0.1,
       BatchNorm gamma = 1, beta = 0."""
    def xavier(key, fan_in, fan_out):
        bound = (6.0 / (fan_in + fan_out)) ** 0.5
        return jax.random.uniform(key, (fan_in, fan_out), jnp.float32,
                                  minval=-bound, maxval=bound)

    k1, k2, k3 = jax.random.split(key, 3)
    w1 = xavier(k1, state_size, fc1_units)
    b1 = jnp.full((1, fc1_units), 0.1, jnp.float32)
    g1 = jnp.ones((1, fc1_units), jnp.float32)
    be1 = jnp.zeros((1, fc1_units), jnp.float32)

    w2 = xavier(k2, fc1_units, fc2_units)
    b2 = jnp.full((1, fc2_units), 0.1, jnp.float32)
    g2 = jnp.ones((1, fc2_units), jnp.float32)
    be2 = jnp.zeros((1, fc2_units), jnp.float32)

    w3 = xavier(k3, fc2_units, action_size)
    b3 = jnp.full((1, action_size), 0.1, jnp.float32)

    return (w1, b1, g1, be1, w2, b2, g2, be2, w3, b3)


def pack_actor_params(raw_params, action_size, mxu_dtype=jnp.bfloat16):
    """Pack raw f32 params into the kernel's 2 tensor inputs:
       * one (384, 128) bf16 weight slab: [ w1 zero-row-padded to 128 input
         rows ; w2 ; w3 zero-padded to 128 output lanes ]
       * one (8, 128) f32 tile holding b1,g1,be1,b2,g2,be2,b3(padded)."""
    (w1, b1, g1, be1, w2, b2, g2, be2, w3, b3) = raw_params
    state_size = w1.shape[0]
    fc1, fc2 = w1.shape[1], w2.shape[1]
    assert fc1 == FC and fc2 == FC, "param packing assumes 128-wide hidden layers"
    assert state_size <= LANES, "param packing assumes state_size <= 128"
    assert action_size <= LANES, "param packing assumes action_size <= 128"

    w1p = jnp.zeros((LANES, fc1), jnp.float32).at[:state_size, :].set(w1)
    w3p = jnp.zeros((fc2, LANES), jnp.float32).at[:, :action_size].set(w3)
    b3p = jnp.zeros((1, LANES), jnp.float32).at[:, :action_size].set(b3)

    w_slab = jnp.concatenate([w1p, w2, w3p], axis=0).astype(mxu_dtype)

    pvec = jnp.zeros((8, LANES), jnp.float32)
    pvec = pvec.at[0:1].set(b1).at[1:2].set(g1).at[2:3].set(be1)
    pvec = pvec.at[3:4].set(b2).at[4:5].set(g2).at[5:6].set(be2)
    pvec = pvec.at[6:7].set(b3p)

    return (w_slab, pvec, action_size)


def actor_reference(x, raw_params, mxu_dtype=jnp.float32):
    """Pure-JAX reference for ONE evaluation (one BN batch). With
       mxu_dtype=bf16 it mirrors the kernel's numerics (bf16 MXU inputs,
       f32 accumulation, one-pass BN)."""
    (w1, b1, g1, be1, w2, b2, g2, be2, w3, b3) = raw_params

    def mm(a, w):
        return jnp.dot(a.astype(mxu_dtype), w.astype(mxu_dtype),
                       preferred_element_type=jnp.float32)

    h = jnp.maximum(mm(x, w1) + b1, 0.0)
    h = _batchnorm_train(h, g1, be1)
    h = jnp.maximum(mm(h, w2) + b2, 0.0)
    h = _batchnorm_train(h, g2, be2)
    return jnp.tanh(mm(h, w3) + b3)


if __name__ == "__main__":
    state_size = 32
    action_size = 4
    B = 8          # BatchNorm batch per evaluation (>= 2 required for BN stats)
    E = 4          # independent evaluations amortized inside one pallas_call

    key = jax.random.PRNGKey(0)
    kparams, kx = jax.random.split(key)
    raw_params = init_actor_params(kparams, state_size, action_size)
    kernel_params = pack_actor_params(raw_params, action_size)

    x = jax.random.normal(kx, (E * B, state_size), jnp.float32)
    x_pad = pad_states(x)

    out_slab = jax.block_until_ready(
        actor_forward(x_pad, kernel_params, eval_batch=B))
    assert out_slab.shape == (E * B, LANES)

    # Slice to action_size only at the point of consumption (kept off the
    # kernel's lane-dense store path).
    out = out_slab[:, :action_size]

    # Tight check vs a reference matching the kernel numerics exactly
    # (bf16 MXU inputs, f32 accumulation, per-evaluation BN batches).
    ref_matched = jnp.concatenate(
        [actor_reference(x[e * B:(e + 1) * B], raw_params, mxu_dtype=jnp.bfloat16)
         for e in range(E)], axis=0)
    assert jnp.allclose(out, ref_matched, atol=1e-4, rtol=1e-4), \
        "mismatch vs bf16-matched reference"

    # Sanity band vs pure-f32 module semantics (bf16 weight drift is bounded).
    ref_f32 = jnp.concatenate(
        [actor_reference(x[e * B:(e + 1) * B], raw_params, mxu_dtype=jnp.float32)
         for e in range(E)], axis=0)
    assert float(jnp.max(jnp.abs(out - ref_f32))) < 0.1, \
        "bf16 drift vs f32 reference larger than expected"

    print("KERNEL_OK")
</pallas_src>

<mosaic_0001>
module attributes {stable_mosaic.version = 11 : i64} {
  func.func @actor_kernel(%arg0: i32, %arg1: memref<8x128xf32, #tpu.memory_space<vmem>>, %arg2: memref<384x128xbf16, #tpu.memory_space<vmem>>, %arg3: memref<8x128xf32, #tpu.memory_space<vmem>>, %arg4: memref<8x128xf32, #tpu.memory_space<vmem>>) attributes {dimension_semantics = [#tpu.dimension_semantics<parallel>], iteration_bounds = array<i64: 4>, scalar_prefetch = 0 : i64, scratch_operands = 0 : i64, tpu.core_type = #tpu.core_type<tc>, window_params = [{transform_indices = @transform_0, window_bounds = array<i64: 8, 128>}, {pipeline_mode = #tpu.pipeline_mode<synchronous>, transform_indices = @transform_1, window_bounds = array<i64: 384, 128>}, {pipeline_mode = #tpu.pipeline_mode<synchronous>, transform_indices = @transform_2, window_bounds = array<i64: 8, 128>}, {transform_indices = @transform_3, window_bounds = array<i64: 8, 128>}]} {
    %c0 = arith.constant 0 : index
    %c0_0 = arith.constant 0 : index
    %0 = vector.load %arg3[%c0, %c0_0] : memref<8x128xf32, #tpu.memory_space<vmem>>, vector<8x128xf32>
    %1 = vector.extract_strided_slice %0 {offsets = [0, 0], sizes = [1, 128], strides = [1, 1]} : vector<8x128xf32> to vector<1x128xf32>
    %2 = vector.extract_strided_slice %0 {offsets = [1, 0], sizes = [1, 128], strides = [1, 1]} : vector<8x128xf32> to vector<1x128xf32>
    %3 = vector.extract_strided_slice %0 {offsets = [2, 0], sizes = [1, 128], strides = [1, 1]} : vector<8x128xf32> to vector<1x128xf32>
    %4 = vector.extract_strided_slice %0 {offsets = [3, 0], sizes = [1, 128], strides = [1, 1]} : vector<8x128xf32> to vector<1x128xf32>
    %5 = vector.extract_strided_slice %0 {offsets = [4, 0], sizes = [1, 128], strides = [1, 1]} : vector<8x128xf32> to vector<1x128xf32>
    %6 = vector.extract_strided_slice %0 {offsets = [5, 0], sizes = [1, 128], strides = [1, 1]} : vector<8x128xf32> to vector<1x128xf32>
    %7 = vector.extract_strided_slice %0 {offsets = [6, 0], sizes = [1, 128], strides = [1, 1]} : vector<8x128xf32> to vector<1x128xf32>
    %c0_1 = arith.constant 0 : index
    %c0_2 = arith.constant 0 : index
    %8 = vector.load %arg2[%c0_1, %c0_2] : memref<384x128xbf16, #tpu.memory_space<vmem>>, vector<128x128xbf16>
    %c128 = arith.constant 128 : index
    %c0_3 = arith.constant 0 : index
    %9 = vector.load %arg2[%c128, %c0_3] : memref<384x128xbf16, #tpu.memory_space<vmem>>, vector<128x128xbf16>
    %c256 = arith.constant 256 : index
    %c0_4 = arith.constant 0 : index
    %10 = vector.load %arg2[%c256, %c0_4] : memref<384x128xbf16, #tpu.memory_space<vmem>>, vector<128x128xbf16>
    %c0_5 = arith.constant 0 : index
    %c0_6 = arith.constant 0 : index
    %11 = vector.load %arg1[%c0_5, %c0_6] : memref<8x128xf32, #tpu.memory_space<vmem>>, vector<8x128xf32>
    %12 = arith.truncf %11 : vector<8x128xf32> to vector<8x128xbf16>
    %cst = arith.constant dense<0.000000e+00> : vector<8x128xf32>
    %13 = tpu.matmul %12, %8, %cst {dimension_numbers = #tpu.dot_dimension_numbers<[1], [0], [0], [1], [0, 0, 1, 1], [], []>} : vector<8x128xbf16>, vector<128x128xbf16>, vector<8x128xf32> -> vector<8x128xf32>
    %14 = vector.broadcast %1 : vector<1x128xf32> to vector<8x128xf32>
    %15 = arith.addf %13, %14 : vector<8x128xf32>
    %cst_7 = arith.constant 0.000000e+00 : f32
    %16 = vector.broadcast %cst_7 : f32 to vector<8x128xf32>
    %17 = arith.maximumf %15, %16 : vector<8x128xf32>
    %cst_8 = arith.constant dense<0.000000e+00> : vector<128xf32>
    %18 = vector.multi_reduction <add>, %17, %cst_8 [0] : vector<8x128xf32> to vector<128xf32>
    %19 = vector.shape_cast %18 : vector<128xf32> to vector<1x128xf32>
    %20 = arith.mulf %17, %17 : vector<8x128xf32>
    %cst_9 = arith.constant dense<0.000000e+00> : vector<128xf32>
    %21 = vector.multi_reduction <add>, %20, %cst_9 [0] : vector<8x128xf32> to vector<128xf32>
    %22 = vector.shape_cast %21 : vector<128xf32> to vector<1x128xf32>
    %cst_10 = arith.constant 1.250000e-01 : f32
    %23 = vector.broadcast %cst_10 : f32 to vector<1x128xf32>
    %24 = arith.mulf %19, %23 : vector<1x128xf32>
    %cst_11 = arith.constant 1.250000e-01 : f32
    %25 = vector.broadcast %cst_11 : f32 to vector<1x128xf32>
    %26 = arith.mulf %22, %25 : vector<1x128xf32>
    %27 = arith.mulf %24, %24 : vector<1x128xf32>
    %28 = arith.subf %26, %27 : vector<1x128xf32>
    %cst_12 = arith.constant 0.000000e+00 : f32
    %29 = vector.broadcast %cst_12 : f32 to vector<1x128xf32>
    %30 = arith.maximumf %28, %29 : vector<1x128xf32>
    %cst_13 = arith.constant 9.99999974E-6 : f32
    %31 = vector.broadcast %cst_13 : f32 to vector<1x128xf32>
    %32 = arith.addf %30, %31 : vector<1x128xf32>
    %33 = math.rsqrt %32 : vector<1x128xf32>
    %34 = arith.mulf %2, %33 : vector<1x128xf32>
    %35 = arith.mulf %24, %34 : vector<1x128xf32>
    %36 = arith.subf %3, %35 : vector<1x128xf32>
    %37 = vector.broadcast %34 : vector<1x128xf32> to vector<8x128xf32>
    %38 = arith.mulf %17, %37 : vector<8x128xf32>
    %39 = vector.broadcast %36 : vector<1x128xf32> to vector<8x128xf32>
    %40 = arith.addf %38, %39 : vector<8x128xf32>
    %41 = arith.truncf %40 : vector<8x128xf32> to vector<8x128xbf16>
    %cst_14 = arith.constant dense<0.000000e+00> : vector<8x128xf32>
    %42 = tpu.matmul %41, %9, %cst_14 {dimension_numbers = #tpu.dot_dimension_numbers<[1], [0], [0], [1], [0, 0, 1, 1], [], []>} : vector<8x128xbf16>, vector<128x128xbf16>, vector<8x128xf32> -> vector<8x128xf32>
    %43 = vector.broadcast %4 : vector<1x128xf32> to vector<8x128xf32>
    %44 = arith.addf %42, %43 : vector<8x128xf32>
    %cst_15 = arith.constant 0.000000e+00 : f32
    %45 = vector.broadcast %cst_15 : f32 to vector<8x128xf32>
    %46 = arith.maximumf %44, %45 : vector<8x128xf32>
    %cst_16 = arith.constant dense<0.000000e+00> : vector<128xf32>
    %47 = vector.multi_reduction <add>, %46, %cst_16 [0] : vector<8x128xf32> to vector<128xf32>
    %48 = vector.shape_cast %47 : vector<128xf32> to vector<1x128xf32>
    %49 = arith.mulf %46, %46 : vector<8x128xf32>
    %cst_17 = arith.constant dense<0.000000e+00> : vector<128xf32>
    %50 = vector.multi_reduction <add>, %49, %cst_17 [0] : vector<8x128xf32> to vector<128xf32>
    %51 = vector.shape_cast %50 : vector<128xf32> to vector<1x128xf32>
    %cst_18 = arith.constant 1.250000e-01 : f32
    %52 = vector.broadcast %cst_18 : f32 to vector<1x128xf32>
    %53 = arith.mulf %48, %52 : vector<1x128xf32>
    %cst_19 = arith.constant 1.250000e-01 : f32
    %54 = vector.broadcast %cst_19 : f32 to vector<1x128xf32>
    %55 = arith.mulf %51, %54 : vector<1x128xf32>
    %56 = arith.mulf %53, %53 : vector<1x128xf32>
    %57 = arith.subf %55, %56 : vector<1x128xf32>
    %cst_20 = arith.constant 0.000000e+00 : f32
    %58 = vector.broadcast %cst_20 : f32 to vector<1x128xf32>
    %59 = arith.maximumf %57, %58 : vector<1x128xf32>
    %cst_21 = arith.constant 9.99999974E-6 : f32
    %60 = vector.broadcast %cst_21 : f32 to vector<1x128xf32>
    %61 = arith.addf %59, %60 : vector<1x128xf32>
    %62 = math.rsqrt %61 : vector<1x128xf32>
    %63 = arith.mulf %5, %62 : vector<1x128xf32>
    %64 = arith.mulf %53, %63 : vector<1x128xf32>
    %65 = arith.subf %6, %64 : vector<1x128xf32>
    %66 = vector.broadcast %63 : vector<1x128xf32> to vector<8x128xf32>
    %67 = arith.mulf %46, %66 : vector<8x128xf32>
    %68 = vector.broadcast %65 : vector<1x128xf32> to vector<8x128xf32>
    %69 = arith.addf %67, %68 : vector<8x128xf32>
    %70 = arith.truncf %69 : vector<8x128xf32> to vector<8x128xbf16>
    %cst_22 = arith.constant dense<0.000000e+00> : vector<8x128xf32>
    %71 = tpu.matmul %70, %10, %cst_22 {dimension_numbers = #tpu.dot_dimension_numbers<[1], [0], [0], [1], [0, 0, 1, 1], [], []>} : vector<8x128xbf16>, vector<128x128xbf16>, vector<8x128xf32> -> vector<8x128xf32>
    %72 = vector.broadcast %7 : vector<1x128xf32> to vector<8x128xf32>
    %73 = arith.addf %71, %72 : vector<8x128xf32>
    %74 = math.tanh %73 : vector<8x128xf32>
    %c0_23 = arith.constant 0 : index
    %c0_24 = arith.constant 0 : index
    %75 = vector.load %arg4[%c0_23, %c0_24] : memref<8x128xf32, #tpu.memory_space<vmem>>, vector<8x128xf32>
    tpu.vector_store %arg4[%c0_23, %c0_24], %74 {strides = array<i32>} : memref<8x128xf32, #tpu.memory_space<vmem>>, vector<8x128xf32>,
    return
  }
  func.func @transform_0(%arg0: i32) -> (i32, i32) {
    %c0_i32 = arith.constant 0 : i32
    %c0_i32_0 = arith.constant 0 : i32
    return %arg0, %c0_i32 : i32, i32
  }
  func.func @transform_1(%arg0: i32) -> (i32, i32) {
    %c0_i32 = arith.constant 0 : i32
    %c0_i32_0 = arith.constant 0 : i32
    %c0_i32_1 = arith.constant 0 : i32
    return %c0_i32, %c0_i32_0 : i32, i32
  }
  func.func @transform_2(%arg0: i32) -> (i32, i32) {
    %c0_i32 = arith.constant 0 : i32
    %c0_i32_0 = arith.constant 0 : i32
    %c0_i32_1 = arith.constant 0 : i32
    return %c0_i32, %c0_i32_0 : i32, i32
  }
  func.func @transform_3(%arg0: i32) -> (i32, i32) {
    %c0_i32 = arith.constant 0 : i32
    %c0_i32_0 = arith.constant 0 : i32
    return %arg0, %c0_i32 : i32, i32
  }
}

</mosaic_0001>

<llo_original>
// kernel: tpu_custom_call.1
$region0: #{tpu_custom_call.1}
  #allocation0 [shape = 'u32[]', space=smem, size = 0x4, offset = 0x4, fixed_abs, tag = 'smem constant byte address 0x4 - core index']
  #allocation1 [shape = 'u32[144,128]{1,0:T(1,128)}', space=vmem, size = 0x12000, scoped, tag = 'internal scratch']
  %s0 = inlined_call_operand.hbm [shape: f32[32,128], index: 0, kind: input, shape index: {}]
  %s1 = inlined_call_operand.hbm [shape: bf16[384,128], index: 1, kind: input, shape index: {}]
  %s2 = inlined_call_operand.hbm [shape: f32[8,128], index: 2, kind: input, shape index: {}]
  %s3 = inlined_call_operand.hbm [shape: f32[32,128], index: 3, kind: output, shape index: {}]
  %s4 = sld [smem:[#allocation0]]
  $region57: #{tpu_custom_call.1} parent=0
    _
  %s6 = ssub.s32 1, %s4
  %s7 = scalar_select 0, %s6, %s4
  $region1: #{tpu_custom_call.1} parent=0
    #allocation2 [shape = 'u8[8192]{0}', space=vmem, size = 0x2000, scoped, tag = 'input window, operand 0']
    #allocation3 [shape = 's32[2]{0}', space=sflag, size = 0x8, scoped, tag = 'scoped memory for tpu_custom_call.1']
    #allocation4 [shape = 's32[2]{0}', space=sflag, size = 0x8, scoped, tag = 'scoped memory for tpu_custom_call.1']
    #allocation5 [shape = 'u8[98304]{0}', space=vmem, size = 0x18000, scoped, tag = 'input window, operand 1, single buffered']
    #allocation6 [shape = 's32[1]{0}', space=sflag, size = 0x4, scoped, tag = 'scoped memory for tpu_custom_call.1']
    #allocation7 [shape = 'u8[4096]{0}', space=vmem, size = 0x1000, scoped, tag = 'input window, operand 2, single buffered']
    #allocation8 [shape = 'u8[8192]{0}', space=vmem, size = 0x2000, scoped, tag = 'output window, operand 0']
    %8 = vsyncpa [#allocation3], 0
    %s9 = scalar_lea.sflag [#allocation3], 1
    %10 = vsyncpa %s9, 0
    %11 = vsyncpa [#allocation6], 0
    %12 = vsyncpa [#allocation4], 0
    %s13 = scalar_lea.sflag [#allocation4], 1
    %14 = vsyncpa %s13, 0
    loop: start=0, step=1, limit=6
    $region2: #{tpu_custom_call.1} parent=1 // loop_pre_header
      _
    $region3: #{tpu_custom_call.1} parent=1 // loop_header
      %s16 = sphi 0, %s20
      %p17 = scmp.ge.s32.totalorder %s16, 6
      %s26 = sphi 0, %s28
      %s29 = sphi 0, %s26
      %s30 = sphi 0, %s29
      %s46 = sphi 0, %s30
      %s50 = sphi 0, %s50
      %s52 = sphi 0, %s50
      %s53 = sphi 0, %s52
      %s67 = sphi 0, %s53
      %s71 = sphi 0, %s71
      %s73 = sphi 0, %s71
      %s74 = sphi 0, %s73
      %s88 = sphi 0, %s74
      %s94 = sphi 0, %s96
      %s97 = sphi 0, %s94
      %s98 = sphi 0, %s97
      %s114 = sphi 0, %s98
    $region4: #{tpu_custom_call.1} parent=1 // loop_header_branch
      %19 = sbr.rel (%p17) target = $region8
    $region5: #{tpu_custom_call.1} parent=1 // loop_body
      %s21 = ssub.s32 %s16, 1
      %s22 = ssub.s32 %s16, 2
      %s23 = sadd.s32 %s16, 1
      %s24 = ssub.s32 %s16, %s23
      %p25 = scmp.eq.s32.totalorder %s24, 0
      %s27 = sadd.s32 %s26, 1
      %s28 = scalar_select %p25, %s26, %s27
      %p31 = pneg %p25
      %p32 = scmp.eq.s32.totalorder %s16, 3
      %p33 = por %p31, %p32
      %p34 = scmp.ne.s32.totalorder %s26, %s29
      %p35 = scmp.eq.s32.totalorder %s16, 0
      %p36 = por %p34, %p35
      %p37 = scmp.ne.s32.totalorder %s26, %s29
      %p38 = scmp.eq.s32.totalorder %s21, 3
      %p39 = por %p37, %p38
      %p40 = scmp.ne.s32.totalorder %s29, %s30
      %p41 = scmp.eq.s32.totalorder %s21, 0
      %p42 = por %p40, %p41
      %p43 = scmp.ne.s32.totalorder %s29, %s30
      %p44 = scmp.eq.s32.totalorder %s22, 3
      %p45 = por %p43, %p44
      %p47 = scmp.ne.s32.totalorder %s30, %s46
      %p48 = scmp.eq.s32.totalorder %s22, 0
      %p49 = por %p47, %p48
      %s51 = sadd.s32 %s50, 1
      %p54 = scmp.eq.s32.totalorder %s16, 3
      %p55 = scmp.ne.s32.totalorder %s50, %s52
      %p56 = scmp.eq.s32.totalorder %s16, 0
      %p57 = por %p55, %p56
      %p58 = scmp.ne.s32.totalorder %s50, %s52
      %p59 = scmp.eq.s32.totalorder %s21, 3
      %p60 = por %p58, %p59
      %p61 = scmp.ne.s32.totalorder %s52, %s53
      %p62 = scmp.eq.s32.totalorder %s21, 0
      %p63 = por %p61, %p62
      %p64 = scmp.ne.s32.totalorder %s52, %s53
      %p65 = scmp.eq.s32.totalorder %s22, 3
      %p66 = por %p64, %p65
      %p68 = scmp.ne.s32.totalorder %s53, %s67
      %p69 = scmp.eq.s32.totalorder %s22, 0
      %p70 = por %p68, %p69
      %s72 = sadd.s32 %s71, 1
      %p75 = scmp.eq.s32.totalorder %s16, 3
      %p76 = scmp.ne.s32.totalorder %s71, %s73
      %p77 = scmp.eq.s32.totalorder %s16, 0
      %p78 = por %p76, %p77
      %p79 = scmp.ne.s32.totalorder %s71, %s73
      %p80 = scmp.eq.s32.totalorder %s21, 3
      %p81 = por %p79, %p80
      %p82 = scmp.ne.s32.totalorder %s73, %s74
      %p83 = scmp.eq.s32.totalorder %s21, 0
      %p84 = por %p82, %p83
      %p85 = scmp.ne.s32.totalorder %s73, %s74
      %p86 = scmp.eq.s32.totalorder %s22, 3
      %p87 = por %p85, %p86
      %p89 = scmp.ne.s32.totalorder %s74, %s88
      %p90 = scmp.eq.s32.totalorder %s22, 0
      %p91 = por %p89, %p90
      %s92 = ssub.s32 %s16, %s23
      %p93 = scmp.eq.s32.totalorder %s92, 0
      %s95 = sadd.s32 %s94, 1
      %s96 = scalar_select %p93, %s94, %s95
      %p99 = pneg %p93
      %p100 = scmp.eq.s32.totalorder %s16, 3
      %p101 = por %p99, %p100
      %p102 = scmp.ne.s32.totalorder %s94, %s97
      %p103 = scmp.eq.s32.totalorder %s16, 0
      %p104 = por %p102, %p103
      %p105 = scmp.ne.s32.totalorder %s94, %s97
      %p106 = scmp.eq.s32.totalorder %s21, 3
      %p107 = por %p105, %p106
      %p108 = scmp.ne.s32.totalorder %s97, %s98
      %p109 = scmp.eq.s32.totalorder %s21, 0
      %p110 = por %p108, %p109
      %p111 = scmp.ne.s32.totalorder %s97, %s98
      %p112 = scmp.eq.s32.totalorder %s22, 3
      %p113 = por %p111, %p112
      %p115 = scmp.ne.s32.totalorder %s98, %s114
      %p116 = scmp.eq.s32.totalorder %s22, 0
      %p117 = por %p115, %p116
      %p118 = scmp.le.s32.totalorder 1, %s16
      %p119 = scmp.lt.s32.totalorder %s16, 5
      %p120 = pnand %p118, %p119
      %p121 = pneg %p120
      // Predicated region
      $region9: #{tpu_custom_call.1} parent=5 // pred_check
        _
      $region10: #{tpu_custom_call.1} parent=5 // pred_check_branch
        %123 = sbr.rel (%p120) target = $region12
      $region11: #{tpu_custom_call.1} parent=5 // pred_region
        %s124 = ssub.s32 %s16, 1
        // Predicated region
        $region13: #{tpu_custom_call.1} parent=11 // pred_check
          %p125 = pneg %p63
        $region14: #{tpu_custom_call.1} parent=11 // pred_check_branch
          %127 = sbr.rel (%p125) target = $region16
        $region15: #{tpu_custom_call.1} parent=11 // pred_region
          %s129 = ssub.s32 3072, 3072
          %130 = vsyncadd [#allocation6], %s129
          %s131 = sshll.u32 [#allocation5], 4
          %s132 = int_to_ptr.vmem [resolvable:$true] %s131
          %137 = dma.hbm_to_vmem [thread:$0]  %s1, 3072, %s132, [#allocation6], 64, 64, 4
        $region16: #{tpu_custom_call.1} parent=11 // pred_fallthru
          _
        // Predicated region
        $region17: #{tpu_custom_call.1} parent=11 // pred_check
          %p138 = pneg %p84
        $region18: #{tpu_custom_call.1} parent=11 // pred_check_branch
          %140 = sbr.rel (%p138) target = $region20
        $region19: #{tpu_custom_call.1} parent=11 // pred_region
          %s142 = ssub.s32 128, 128
          %143 = vsyncadd [#allocation6], %s142
          %s145 = sshll.u32 [#allocation7], 4
          %s146 = int_to_ptr.vmem [resolvable:$true] %s145
          %148 = dma.hbm_to_vmem [thread:$0]  %s2, 128, %s146, [#allocation6]
        $region20: #{tpu_custom_call.1} parent=11 // pred_fallthru
          _
      $region12: #{tpu_custom_call.1} parent=5 // pred_fallthru
        _
      %p149 = scmp.lt.s32.totalorder %s16, 4
      // Predicated region
      $region21: #{tpu_custom_call.1} parent=5 // pred_check
        %p150 = pneg %p149
      $region22: #{tpu_custom_call.1} parent=5 // pred_check_branch
        %152 = sbr.rel (%p150) target = $region24
      $region23: #{tpu_custom_call.1} parent=5 // pred_region
        // Predicated region
        $region25: #{tpu_custom_call.1} parent=23 // pred_check
          %p153 = pneg %p36
        $region26: #{tpu_custom_call.1} parent=23 // pred_check_branch
          %155 = sbr.rel (%p153) target = $region28
        $region27: #{tpu_custom_call.1} parent=23 // pred_region
          %s156 = sand.u32 %s26, 1
          %s157 = scalar_lea.sflag [#allocation3], %s156
          %s158 = sand.u32 %s26, 1
          %s159 = smul.addr %s158, 8
          %s160 = scalar_lea.vmem [#allocation2], %s159
          %s162 = ssub.s32 128, 128
          %163 = vsyncadd %s157, %s162
          %s164 = smul.addr %s16, 128
          %s165 = scalar_lea.hbm %s0, %s164
          %s167 = sshll.u32 %s160, 4
          %s168 = int_to_ptr.vmem [resolvable:$true] %s167
          %170 = dma.hbm_to_vmem [thread:$0]  %s165, 128, %s168, %s157
        $region28: #{tpu_custom_call.1} parent=23 // pred_fallthru
          _
      $region24: #{tpu_custom_call.1} parent=5 // pred_fallthru
        _
      %p171 = scmp.le.s32.totalorder 1, %s16
      %p172 = scmp.lt.s32.totalorder %s16, 5
      %p173 = pnand %p171, %p172
      %p174 = pneg %p173
      // Predicated region
      $region29: #{tpu_custom_call.1} parent=5 // pred_check
        _
      $region30: #{tpu_custom_call.1} parent=5 // pred_check_branch
        %176 = sbr.rel (%p173) target = $region32
      $region31: #{tpu_custom_call.1} parent=5 // pred_region
        %s177 = ssub.s32 %s16, 1
        %s178 = sand.u32 %s29, 1
        %s179 = scalar_lea.sflag [#allocation3], %s178
        %s180 = sand.u32 %s29, 1
        %s181 = smul.addr %s180, 8
        %s182 = scalar_lea.vmem [#allocation2], %s181
        // Predicated region
        $region33: #{tpu_custom_call.1} parent=31 // pred_check
          %p183 = pneg %p42
        $region34: #{tpu_custom_call.1} parent=31 // pred_check_branch
          %185 = sbr.rel (%p183) target = $region36
        $region35: #{tpu_custom_call.1} parent=31 // pred_region
          %186 = dma.done %s179, 128
        $region36: #{tpu_custom_call.1} parent=31 // pred_fallthru
          _
        // Predicated region
        $region37: #{tpu_custom_call.1} parent=31 // pred_check
          %p187 = pneg %p63
        $region38: #{tpu_custom_call.1} parent=31 // pred_check_branch
          %189 = sbr.rel (%p187) target = $region40
        $region39: #{tpu_custom_call.1} parent=31 // pred_region
          %190 = dma.done [#allocation6], 3072
        $region40: #{tpu_custom_call.1} parent=31 // pred_fallthru
          _
        // Predicated region
        $region41: #{tpu_custom_call.1} parent=31 // pred_check
          %p191 = pneg %p84
        $region42: #{tpu_custom_call.1} parent=31 // pred_check_branch
          %193 = sbr.rel (%p191) target = $region44
        $region43: #{tpu_custom_call.1} parent=31 // pred_region
          %194 = dma.done [#allocation6], 128
        $region44: #{tpu_custom_call.1} parent=31 // pred_fallthru
          _
        %s195 = sand.u32 %s29, 1
        %s196 = scalar_lea.sflag [#allocation3], %s195
        %s197 = sand.u32 %s29, 1
        %s198 = smul.addr %s197, 8
        %s199 = scalar_lea.vmem [#allocation2], %s198
        %p200 = pneg %p42
        %p201 = pneg %p39
        %p202 = pneg %p63
        %p203 = pneg %p60
        %p204 = pneg %p84
        %p205 = pneg %p81
        %p206 = pneg %p110
        %p207 = pneg %p107
        %s208 = sand.u32 %s97, 1
        %s209 = scalar_lea.sflag [#allocation4], %s208
        %s210 = sand.u32 %s97, 1
        %s211 = smul.addr %s210, 8
        %s212 = scalar_lea.vmem [#allocation8], %s211
        %v214 = vld [vmem:[#allocation7] sm:$0xff]
        %v215 = vld [vmem:[#allocation5] sm:$0xf]
        %v216 = vld [vmem:[#allocation5 + $0x4] sm:$0xf]
        %v217 = vld [vmem:[#allocation5 + $0x8] sm:$0xf]
        %v218 = vld [vmem:[#allocation5 + $0xc] sm:$0xf]
        %v219 = vld [vmem:[#allocation5 + $0x10] sm:$0xf]
        %v220 = vld [vmem:[#allocation5 + $0x14] sm:$0xf]
        %v221 = vld [vmem:[#allocation5 + $0x18] sm:$0xf]
        %v222 = vld [vmem:[#allocation5 + $0x1c] sm:$0xf]
        %v223 = vld [vmem:[#allocation5 + $0x20] sm:$0xf]
        %v224 = vld [vmem:[#allocation5 + $0x24] sm:$0xf]
        %v225 = vld [vmem:[#allocation5 + $0x28] sm:$0xf]
        %v226 = vld [vmem:[#allocation5 + $0x2c] sm:$0xf]
        %v227 = vld [vmem:[#allocation5 + $0x30] sm:$0xf]
        %v228 = vld [vmem:[#allocation5 + $0x34] sm:$0xf]
        %v229 = vld [vmem:[#allocation5 + $0x38] sm:$0xf]
        %v230 = vld [vmem:[#allocation5 + $0x3c] sm:$0xf]
        %v231 = vld [vmem:[#allocation5 + $0x40] sm:$0xf]
        %v232 = vld [vmem:[#allocation5 + $0x44] sm:$0xf]
        %v233 = vld [vmem:[#allocation5 + $0x48] sm:$0xf]
        %v234 = vld [vmem:[#allocation5 + $0x4c] sm:$0xf]
        %v235 = vld [vmem:[#allocation5 + $0x50] sm:$0xf]
        %v236 = vld [vmem:[#allocation5 + $0x54] sm:$0xf]
        %v237 = vld [vmem:[#allocation5 + $0x58] sm:$0xf]
        %v238 = vld [vmem:[#allocation5 + $0x5c] sm:$0xf]
        %v239 = vld [vmem:[#allocation5 + $0x60] sm:$0xf]
        %v240 = vld [vmem:[#allocation5 + $0x64] sm:$0xf]
        %v241 = vld [vmem:[#allocation5 + $0x68] sm:$0xf]
        %v242 = vld [vmem:[#allocation5 + $0x6c] sm:$0xf]
        %v243 = vld [vmem:[#allocation5 + $0x70] sm:$0xf]
        %v244 = vld [vmem:[#allocation5 + $0x74] sm:$0xf]
        %v245 = vld [vmem:[#allocation5 + $0x78] sm:$0xf]
        %v246 = vld [vmem:[#allocation5 + $0x7c] sm:$0xf]
        %v247 = vld [vmem:[#allocation5 + $0x80] sm:$0xf]
        %v248 = vld [vmem:[#allocation5 + $0x84] sm:$0xf]
        %v249 = vld [vmem:[#allocation5 + $0x88] sm:$0xf]
        %v250 = vld [vmem:[#allocation5 + $0x8c] sm:$0xf]
        %v251 = vld [vmem:[#allocation5 + $0x90] sm:$0xf]
        %v252 = vld [vmem:[#allocation5 + $0x94] sm:$0xf]
        %v253 = vld [vmem:[#allocation5 + $0x98] sm:$0xf]
        %v254 = vld [vmem:[#allocation5 + $0x9c] sm:$0xf]
        %v255 = vld [vmem:[#allocation5 + $0xa0] sm:$0xf]
        %v256 = vld [vmem:[#allocation5 + $0xa4] sm:$0xf]
        %v257 = vld [vmem:[#allocation5 + $0xa8] sm:$0xf]
        %v258 = vld [vmem:[#allocation5 + $0xac] sm:$0xf]
        %v259 = vld [vmem:[#allocation5 + $0xb0] sm:$0xf]
        %v260 = vld [vmem:[#allocation5 + $0xb4] sm:$0xf]
        %v261 = vld [vmem:[#allocation5 + $0xb8] sm:$0xf]
        %v262 = vld [vmem:[#allocation5 + $0xbc] sm:$0xf]
        %v263 = vld [vmem:[%s182] sm:$0xff]
        %v264 = vpack.c.bf16 %v263, %v263
        %v265 = vlaneseq
        %v266 = vshrl.u32 %v265, 7
        %v267 = vsub.s32 0, %v266
        %v268 = vrot.slane %v214, %v267
        %v285 = vunpack.c.l.b16 %v215
        %v286 = vunpack.c.l.b16 %v216
        %v287 = vunpack.c.l.b16 %v217
        %v288 = vunpack.c.l.b16 %v218
        %v289 = vunpack.c.l.b16 %v219
        %v290 = vunpack.c.l.b16 %v220
        %v291 = vunpack.c.l.b16 %v221
        %v292 = vunpack.c.l.b16 %v222
        %v293 = vunpack.c.l.b16 %v223
        %v294 = vunpack.c.l.b16 %v224
        %v295 = vunpack.c.l.b16 %v225
        %v296 = vunpack.c.l.b16 %v226
        %v297 = vunpack.c.l.b16 %v227
        %v298 = vunpack.c.l.b16 %v228
        %v299 = vunpack.c.l.b16 %v229
        %v300 = vunpack.c.l.b16 %v230
        %v301 = vpack.c.b16 %v286, %v285
        %v302 = vpack.c.b16 %v288, %v287
        %v303 = vpack.c.b16 %v290, %v289
        %v304 = vpack.c.b16 %v292, %v291
        %v305 = vpack.c.b16 %v294, %v293
        %v306 = vpack.c.b16 %v296, %v295
        %v307 = vpack.c.b16 %v298, %v297
        %v308 = vpack.c.b16 %v300, %v299
        %317 = vmatprep.subr.bf16.mxu0 0
        %318 = vmatpush1.bf16.msra.mxu0 %v301
        %319 = vmatprep.subr.bf16.mxu0 0
        %320 = vmatpush1.bf16.msra.mxu0 %v302
        %321 = vmatprep.subr.bf16.mxu0 0
        %322 = vmatpush1.bf16.msra.mxu0 %v303
        %323 = vmatprep.subr.bf16.mxu0 0
        %324 = vmatpush1.bf16.msra.mxu0 %v304
        %325 = vmatprep.subr.bf16.mxu0 0
        %326 = vmatpush1.bf16.msra.mxu0 %v305
        %327 = vmatprep.subr.bf16.mxu0 0
        %328 = vmatpush1.bf16.msra.mxu0 %v306
        %329 = vmatprep.subr.bf16.mxu0 0
        %330 = vmatpush1.bf16.msra.mxu0 %v307
        %331 = vmatprep.subr.bf16.mxu0 0
        %332 = vmatpush1.bf16.msra.mxu0 %v308
        %333 = vmatprep.subr.bf16.mxu0 0
        %334 = vmatpush1.bf16.msra.mxu0 0
        %335 = vmatprep.subr.bf16.mxu0 0
        %336 = vmatpush1.bf16.msra.mxu0 0
        %337 = vmatprep.subr.bf16.mxu0 0
        %338 = vmatpush1.bf16.msra.mxu0 0
        %339 = vmatprep.subr.bf16.mxu0 0
        %340 = vmatpush1.bf16.msra.mxu0 0
        %341 = vmatprep.subr.bf16.mxu0 0
        %342 = vmatpush1.bf16.msra.mxu0 0
        %343 = vmatprep.subr.bf16.mxu0 0
        %344 = vmatpush1.bf16.msra.mxu0 0
        %345 = vmatprep.subr.bf16.mxu0 0
        %346 = vmatpush1.bf16.msra.mxu0 0
        %347 = vmatprep.subr.bf16.mxu0 0
        %348 = vmatpush1.bf16.msra.mxu0 0
        %349 = vmatprep.mubr.bf16.mxu0 0
        %350 = vmatmul.mubr.bf16.gmra.mrb[0].mxu0 %v264
        %v351 = vpop.f32.mrb[0].mxu0
        %v352 = vadd.f32 %v268, %v351
        %v353 = vpop.f32.mrb[0].mxu0
        %v354 = vpop.f32.mrb[0].mxu0
        %v355 = vpop.f32.mrb[0].mxu0
        %356 = vdwg.mxu0
        %v357 = vmax.f32 %v352, 0.0
        %v358 = vrot.slane %v357, 4
        %v359 = vadd.f32 %v357, %v358
        %v360 = vrot.slane %v359, 2
        %v361 = vadd.f32 %v359, %v360
        %v362 = vrot.slane %v361, 1
        %v363 = vadd.f32 %v361, %v362
        %v364 = vmul.f32 %v357, %v357
        %v365 = vrot.slane %v364, 4
        %v366 = vadd.f32 %v364, %v365
        %v367 = vrot.slane %v366, 2
        %v368 = vadd.f32 %v366, %v367
        %v369 = vrot.slane %v368, 1
        %v370 = vadd.f32 %v368, %v369
        %v371 = vmul.f32 %v363, 0.125
        %v372 = vmul.f32 %v370, 0.125
        %v373 = vmul.f32 %v371, %v371
        %v374 = vsub.f32 %v372, %v373
        %v375 = vmax.f32 %v374, 0.0
        %v376 = vadd.f32 %v375, 1e-05
        %v377 = vrsqrt.pop %v376
        %v378 = vmul.f32 %v214, %v377
        %v379 = vmul.f32 %v371, %v378
        %v381 = vrot.slane %v379, 7
        %v383 = vsub.f32 %v214, %v381
        %v384 = vlaneseq
        %v385 = vshrl.u32 %v384, 7
        %v386 = vsub.s32 1, %v385
        %v387 = vrot.slane %v378, %v386
        %v388 = vmul.f32 %v357, %v387
        %v389 = vlaneseq
        %v390 = vshrl.u32 %v389, 7
        %v391 = vsub.s32 2, %v390
        %v392 = vrot.slane %v383, %v391
        %v393 = vadd.f32 %v388, %v392
        %v394 = vpack.c.bf16 %v393, %v393
        %v395 = vlaneseq
        %v396 = vshrl.u32 %v395, 7
        %v397 = vsub.s32 3, %v396
        %v398 = vrot.slane %v214, %v397
        %v415 = vunpack.c.l.b16 %v231
        %v416 = vunpack.c.l.b16 %v232
        %v417 = vunpack.c.l.b16 %v233
        %v418 = vunpack.c.l.b16 %v234
        %v419 = vunpack.c.l.b16 %v235
        %v420 = vunpack.c.l.b16 %v236
        %v421 = vunpack.c.l.b16 %v237
        %v422 = vunpack.c.l.b16 %v238
        %v423 = vunpack.c.l.b16 %v239
        %v424 = vunpack.c.l.b16 %v240
        %v425 = vunpack.c.l.b16 %v241
        %v426 = vunpack.c.l.b16 %v242
        %v427 = vunpack.c.l.b16 %v243
        %v428 = vunpack.c.l.b16 %v244
        %v429 = vunpack.c.l.b16 %v245
        %v430 = vunpack.c.l.b16 %v246
        %v431 = vpack.c.b16 %v416, %v415
        %v432 = vpack.c.b16 %v418, %v417
        %v433 = vpack.c.b16 %v420, %v419
        %v434 = vpack.c.b16 %v422, %v421
        %v435 = vpack.c.b16 %v424, %v423
        %v436 = vpack.c.b16 %v426, %v425
        %v437 = vpack.c.b16 %v428, %v427
        %v438 = vpack.c.b16 %v430, %v429
        %447 = vmatprep.subr.bf16.mxu0 0
        %448 = vmatpush1.bf16.msra.mxu0 %v431
        %449 = vmatprep.subr.bf16.mxu0 0
        %450 = vmatpush1.bf16.msra.mxu0 %v432
        %451 = vmatprep.subr.bf16.mxu0 0
        %452 = vmatpush1.bf16.msra.mxu0 %v433
        %453 = vmatprep.subr.bf16.mxu0 0
        %454 = vmatpush1.bf16.msra.mxu0 %v434
        %455 = vmatprep.subr.bf16.mxu0 0
        %456 = vmatpush1.bf16.msra.mxu0 %v435
        %457 = vmatprep.subr.bf16.mxu0 0
        %458 = vmatpush1.bf16.msra.mxu0 %v436
        %459 = vmatprep.subr.bf16.mxu0 0
        %460 = vmatpush1.bf16.msra.mxu0 %v437
        %461 = vmatprep.subr.bf16.mxu0 0
        %462 = vmatpush1.bf16.msra.mxu0 %v438
        %463 = vmatprep.subr.bf16.mxu0 0
        %464 = vmatpush1.bf16.msra.mxu0 0
        %465 = vmatprep.subr.bf16.mxu0 0
        %466 = vmatpush1.bf16.msra.mxu0 0
        %467 = vmatprep.subr.bf16.mxu0 0
        %468 = vmatpush1.bf16.msra.mxu0 0
        %469 = vmatprep.subr.bf16.mxu0 0
        %470 = vmatpush1.bf16.msra.mxu0 0
        %471 = vmatprep.subr.bf16.mxu0 0
        %472 = vmatpush1.bf16.msra.mxu0 0
        %473 = vmatprep.subr.bf16.mxu0 0
        %474 = vmatpush1.bf16.msra.mxu0 0
        %475 = vmatprep.subr.bf16.mxu0 0
        %476 = vmatpush1.bf16.msra.mxu0 0
        %477 = vmatprep.subr.bf16.mxu0 0
        %478 = vmatpush1.bf16.msra.mxu0 0
        %479 = vmatprep.mubr.bf16.mxu0 0
        %480 = vmatmul.mubr.bf16.gmra.mrb[0].mxu0 %v394
        %v481 = vpop.f32.mrb[0].mxu0
        %v482 = vadd.f32 %v398, %v481
        %v483 = vpop.f32.mrb[0].mxu0
        %v484 = vpop.f32.mrb[0].mxu0
        %v485 = vpop.f32.mrb[0].mxu0
        %486 = vdwg.mxu0
        %v487 = vmax.f32 %v482, 0.0
        %v488 = vrot.slane %v487, 4
        %v489 = vadd.f32 %v487, %v488
        %v490 = vrot.slane %v489, 2
        %v491 = vadd.f32 %v489, %v490
        %v492 = vrot.slane %v491, 1
        %v493 = vadd.f32 %v491, %v492
        %v494 = vmul.f32 %v487, %v487
        %v495 = vrot.slane %v494, 4
        %v496 = vadd.f32 %v494, %v495
        %v497 = vrot.slane %v496, 2
        %v498 = vadd.f32 %v496, %v497
        %v499 = vrot.slane %v498, 1
        %v500 = vadd.f32 %v498, %v499
        %v501 = vmul.f32 %v493, 0.125
        %v502 = vmul.f32 %v500, 0.125
        %v503 = vmul.f32 %v501, %v501
        %v504 = vsub.f32 %v502, %v503
        %v505 = vmax.f32 %v504, 0.0
        %v506 = vadd.f32 %v505, 1e-05
        %v507 = vrsqrt.pop %v506
        %v508 = vmul.f32 %v214, %v507
        %v509 = vmul.f32 %v501, %v508
        %v511 = vrot.slane %v509, 7
        %v513 = vsub.f32 %v214, %v511
        %v514 = vlaneseq
        %v515 = vshrl.u32 %v514, 7
        %v516 = vsub.s32 4, %v515
        %v517 = vrot.slane %v508, %v516
        %v518 = vmul.f32 %v487, %v517
        %v519 = vlaneseq
        %v520 = vshrl.u32 %v519, 7
        %v521 = vsub.s32 5, %v520
        %v522 = vrot.slane %v513, %v521
        %v523 = vadd.f32 %v518, %v522
        %v524 = vpack.c.bf16 %v523, %v523
        %v525 = vlaneseq
        %v526 = vshrl.u32 %v525, 7
        %v527 = vsub.s32 6, %v526
        %v528 = vrot.slane %v214, %v527
        %v545 = vunpack.c.l.b16 %v247
        %v546 = vunpack.c.l.b16 %v248
        %v547 = vunpack.c.l.b16 %v249
        %v548 = vunpack.c.l.b16 %v250
        %v549 = vunpack.c.l.b16 %v251
        %v550 = vunpack.c.l.b16 %v252
        %v551 = vunpack.c.l.b16 %v253
        %v552 = vunpack.c.l.b16 %v254
        %v553 = vunpack.c.l.b16 %v255
        %v554 = vunpack.c.l.b16 %v256
        %v555 = vunpack.c.l.b16 %v257
        %v556 = vunpack.c.l.b16 %v258
        %v557 = vunpack.c.l.b16 %v259
        %v558 = vunpack.c.l.b16 %v260
        %v559 = vunpack.c.l.b16 %v261
        %v560 = vunpack.c.l.b16 %v262
        %v561 = vpack.c.b16 %v546, %v545
        %v562 = vpack.c.b16 %v548, %v547
        %v563 = vpack.c.b16 %v550, %v549
        %v564 = vpack.c.b16 %v552, %v551
        %v565 = vpack.c.b16 %v554, %v553
        %v566 = vpack.c.b16 %v556, %v555
        %v567 = vpack.c.b16 %v558, %v557
        %v568 = vpack.c.b16 %v560, %v559
        %577 = vmatprep.subr.bf16.mxu0 0
        %578 = vmatpush1.bf16.msra.mxu0 %v561
        %579 = vmatprep.subr.bf16.mxu0 0
        %580 = vmatpush1.bf16.msra.mxu0 %v562
        %581 = vmatprep.subr.bf16.mxu0 0
        %582 = vmatpush1.bf16.msra.mxu0 %v563
        %583 = vmatprep.subr.bf16.mxu0 0
        %584 = vmatpush1.bf16.msra.mxu0 %v564
        %585 = vmatprep.subr.bf16.mxu0 0
        %586 = vmatpush1.bf16.msra.mxu0 %v565
        %587 = vmatprep.subr.bf16.mxu0 0
        %588 = vmatpush1.bf16.msra.mxu0 %v566
        %589 = vmatprep.subr.bf16.mxu0 0
        %590 = vmatpush1.bf16.msra.mxu0 %v567
        %591 = vmatprep.subr.bf16.mxu0 0
        %592 = vmatpush1.bf16.msra.mxu0 %v568
        %593 = vmatprep.subr.bf16.mxu0 0
        %594 = vmatpush1.bf16.msra.mxu0 0
        %595 = vmatprep.subr.bf16.mxu0 0
        %596 = vmatpush1.bf16.msra.mxu0 0
        %597 = vmatprep.subr.bf16.mxu0 0
        %598 = vmatpush1.bf16.msra.mxu0 0
        %599 = vmatprep.subr.bf16.mxu0 0
        %600 = vmatpush1.bf16.msra.mxu0 0
        %601 = vmatprep.subr.bf16.mxu0 0
        %602 = vmatpush1.bf16.msra.mxu0 0
        %603 = vmatprep.subr.bf16.mxu0 0
        %604 = vmatpush1.bf16.msra.mxu0 0
        %605 = vmatprep.subr.bf16.mxu0 0
        %606 = vmatpush1.bf16.msra.mxu0 0
        %607 = vmatprep.subr.bf16.mxu0 0
        %608 = vmatpush1.bf16.msra.mxu0 0
        %609 = vmatprep.mubr.bf16.mxu0 0
        %610 = vmatmul.mubr.bf16.gmra.mrb[0].mxu0 %v524
        %v611 = vpop.f32.mrb[0].mxu0
        %v612 = vadd.f32 %v528, %v611
        %v613 = vpop.f32.mrb[0].mxu0
        %v614 = vpop.f32.mrb[0].mxu0
        %v615 = vpop.f32.mrb[0].mxu0
        %616 = vdwg.mxu0
        %v617 = vtanh.pop %v612
        %618 = vst [vmem:[%s212] sm:$0xff] %v617
        %s619 = sand.u32 %s97, 1
        %s620 = scalar_lea.sflag [#allocation4], %s619
        %s621 = sand.u32 %s97, 1
        %s622 = smul.addr %s621, 8
        %s623 = scalar_lea.vmem [#allocation8], %s622
        // Predicated region
        $region45: #{tpu_custom_call.1} parent=31 // pred_check
          %p624 = pneg %p107
        $region46: #{tpu_custom_call.1} parent=31 // pred_check_branch
          %626 = sbr.rel (%p624) target = $region48
        $region47: #{tpu_custom_call.1} parent=31 // pred_region
          %s628 = ssub.s32 128, 128
          %629 = vsyncadd %s620, %s628
          %s630 = smul.addr %s21, 128
          %s631 = scalar_lea.hbm %s3, %s630
          %s633 = sshll.u32 %s623, 4
          %s634 = int_to_ptr.vmem [resolvable:$true] %s633
          %636 = dma.vmem_to_hbm [thread:$0]  %s634, 128, %s631, %s620
        $region48: #{tpu_custom_call.1} parent=31 // pred_fallthru
          _
      $region32: #{tpu_custom_call.1} parent=5 // pred_fallthru
        _
      %p637 = scmp.le.s32.totalorder 2, %s16
      // Predicated region
      $region49: #{tpu_custom_call.1} parent=5 // pred_check
        %p638 = pneg %p637
      $region50: #{tpu_custom_call.1} parent=5 // pred_check_branch
        %640 = sbr.rel (%p638) target = $region52
      $region51: #{tpu_custom_call.1} parent=5 // pred_region
        %s641 = ssub.s32 %s16, 2
        // Predicated region
        $region53: #{tpu_custom_call.1} parent=51 // pred_check
          %p642 = pneg %p113
        $region54: #{tpu_custom_call.1} parent=51 // pred_check_branch
          %644 = sbr.rel (%p642) target = $region56
        $region55: #{tpu_custom_call.1} parent=51 // pred_region
          %s645 = sand.u32 %s98, 1
          %s646 = scalar_lea.sflag [#allocation4], %s645
          %s647 = sand.u32 %s98, 1
          %s648 = smul.addr %s647, 8
          %s649 = scalar_lea.vmem [#allocation8], %s648
          %650 = dma.done %s646, 128
        $region56: #{tpu_custom_call.1} parent=51 // pred_fallthru
          _
      $region52: #{tpu_custom_call.1} parent=5 // pred_fallthru
        _
    $region6: #{tpu_custom_call.1} parent=1 // loop_footer
      %s20 = sadd.s32 1, %s16
    $region7: #{tpu_custom_call.1} parent=1 // loop_footer_branch
      %15 = sbr.rel target = $region3
    $region8: #{tpu_custom_call.1} parent=1 // loop_exit
      _
    %651 = vsyncpa [#allocation3], 1
    %s652 = scalar_lea.sflag [#allocation3], 1
    %653 = vsyncpa %s652, 1
    %654 = vsyncpa [#allocation6], 1
    %655 = vsyncpa [#allocation4], 1
    %s656 = scalar_lea.sflag [#allocation4], 1
    %657 = vsyncpa %s656, 1

</llo_original>
